<compile_context>
chip_gen: v7x
topology: tpu7x:2x2x1
jax: 0.10.0
libtpu: 0.0.40
codegen_flags: <defaults>
</compile_context>

<pallas_src>
import functools

import jax
import jax.numpy as jnp
from jax.experimental import pallas as pl
from jax.experimental.pallas import tpu as pltpu


def conv_pool_stats_kernel(taps_ref, w_ref, pooled_ref, sub_ref, stats_ref,
                           *, BH, CP):
    """Per grid step (B images):
       one fused conv1+conv2 MXU matmul, 2x2 max-pool, stride-2 subsample,
       and f32 BN partial sums.  BH = B * H2 * W2."""
    taps = taps_ref[0]                                     # [4*BH, KP] bf16

    # Single wide-K matmul for both convolutions (weights fused along N).
    y = jnp.dot(taps, w_ref[...],
                preferred_element_type=jnp.float32)        # [4*BH, 2*CP] f32

    # Rows are ordered (h-parity, w-parity, image, h2, w2), so each of the 4
    # parity groups is a contiguous block of BH rows: pooling and the stride-2
    # subsample are plain row-block ops (no sublane shuffles, no scratch).
    c00 = y[0 * BH:1 * BH]                                 # (h even, w even)
    c01 = y[1 * BH:2 * BH]                                 # (h even, w odd)
    c10 = y[2 * BH:3 * BH]                                 # (h odd,  w even)
    c11 = y[3 * BH:4 * BH]                                 # (h odd,  w odd)

    # conv1 branch: 2x2 max-pool;  conv2 branch: (even, even) subsample.
    pooled = jnp.maximum(jnp.maximum(c00[:, :CP], c01[:, :CP]),
                         jnp.maximum(c10[:, :CP], c11[:, :CP]))   # [BH, CP]
    sub = c00[:, CP:]                                              # [BH, CP]

    # Per-step BN partial sums in f32 (before the bf16 store cast).
    # NOTE: var is later formed as E[x^2]-E[x]^2 (clamped >= 0); fine at these
    # magnitudes, would need centered sums if post-conv means grew very large.
    s1 = jnp.sum(pooled, axis=0, keepdims=True)
    q1 = jnp.sum(pooled * pooled, axis=0, keepdims=True)
    s2 = jnp.sum(sub, axis=0, keepdims=True)
    q2 = jnp.sum(sub * sub, axis=0, keepdims=True)
    stats_ref[0] = jnp.concatenate(
        [s1, q1, s2, q2, jnp.zeros((4, CP), jnp.float32)], axis=0)

    # bf16 only at the final store (halves HBM traffic; math stayed f32).
    pooled_ref[...] = pooled.astype(pooled_ref.dtype)
    sub_ref[...] = sub.astype(sub_ref.dtype)


def custom_basic_block(x_nchw, params, *, eps=1e-5):
    """Forward pass of CustomBasicBlock (stride=1, padding=1 defaults)."""
    N, Cin, H, W = x_nchw.shape
    assert H % 2 == 0 and W % 2 == 0
    Cout = params["w1"].shape[0]
    H2, W2 = H // 2, W // 2
    HQ = H2 * W2
    CP = 128                                   # lane-dense padded channel dim
    KP = 128                                   # lane-dense padded contraction
    K = 9 * Cin
    assert Cout <= CP and K <= KP

    # Images per grid step: amortize per-step overhead and enlarge the matmul
    # M dim.  Cap rows so the per-step working set (taps + y + outputs, double
    # buffered) stays ~<= 8 MiB, well under v7x's 32 MiB scoped VMEM.
    max_rows = 4096
    B = 1
    for b in range(N, 0, -1):
        if N % b == 0 and b * H * W <= max_rows:
            B = b
            break
    G = N // B
    BH = B * HQ

    # ---- wrapper-side im2col (XLA), parity-major rows, K padded to 128 ----
    x = jnp.transpose(x_nchw, (0, 2, 3, 1)).astype(jnp.float32)   # NHWC
    xp = jnp.pad(x, ((0, 0), (1, 1), (1, 1), (0, 0)))
    patches = jnp.concatenate(
        [xp[:, kh:kh + H, kw:kw + W, :] for kh in range(3) for kw in range(3)],
        axis=-1)                                                  # [N, H, W, K]
    taps = patches.reshape(G, B, H2, 2, W2, 2, K)
    taps = jnp.transpose(taps, (0, 3, 5, 1, 2, 4, 6))   # [G, hp, wp, B, H2, W2, K]
    taps = taps.reshape(G, 4 * BH, K)
    taps = jnp.pad(taps, ((0, 0), (0, 0), (0, KP - K))).astype(jnp.bfloat16)

    # Fused conv1/conv2 weights: torch OIHW -> [KP, 2*CP] bf16.  The conv
    # biases are dropped: train-mode BN subtracts the batch mean and
    # max-pool / subsample commute with per-channel constants, so they cancel.
    def to_mat(w):
        wm = jnp.transpose(w, (2, 3, 1, 0)).reshape(K, Cout)
        return jnp.pad(wm, ((0, KP - K), (0, CP - Cout)))

    wcat = jnp.concatenate([to_mat(params["w1"]), to_mat(params["w2"])],
                           axis=1).astype(jnp.bfloat16)           # [KP, 2*CP]

    kernel = functools.partial(conv_pool_stats_kernel, BH=BH, CP=CP)
    pooled, sub, stats = pl.pallas_call(
        kernel,
        grid=(G,),
        in_specs=[
            pl.BlockSpec((1, 4 * BH, KP), lambda g: (g, 0, 0)),
            # Constant block index: Pallas keeps this resident (no re-DMA).
            pl.BlockSpec((KP, 2 * CP), lambda g: (0, 0)),
        ],
        out_specs=(
            pl.BlockSpec((BH, CP), lambda g: (g, 0)),
            pl.BlockSpec((BH, CP), lambda g: (g, 0)),
            pl.BlockSpec((1, 8, CP), lambda g: (g, 0, 0)),
        ),
        out_shape=(
            jax.ShapeDtypeStruct((N * HQ, CP), jnp.bfloat16),
            jax.ShapeDtypeStruct((N * HQ, CP), jnp.bfloat16),
            jax.ShapeDtypeStruct((G, 8, CP), jnp.float32),
        ),
        compiler_params=pltpu.CompilerParams(
            dimension_semantics=("parallel",),
            vmem_limit_bytes=32 * 1024 * 1024),
    )(taps, wcat)

    # ---- tiny O(C) train-mode BN fold + fused epilogue (plain jnp: XLA fuses
    #      affine + ReLU + add + ReLU with the channel slice and transpose) ----
    cnt = jnp.float32(N * HQ)
    tot = jnp.sum(stats, axis=0)[:, :Cout]                        # [8, Cout]
    mean1 = tot[0] / cnt
    var1 = jnp.maximum(tot[1] / cnt - mean1 * mean1, 0.0)
    mean2 = tot[2] / cnt
    var2 = jnp.maximum(tot[3] / cnt - mean2 * mean2, 0.0)
    scale1 = params["gamma1"].astype(jnp.float32) * jax.lax.rsqrt(var1 + eps)
    scale2 = params["gamma2"].astype(jnp.float32) * jax.lax.rsqrt(var2 + eps)
    shift1 = params["beta1"].astype(jnp.float32) - scale1 * mean1
    shift2 = params["beta2"].astype(jnp.float32) - scale2 * mean2

    p = pooled[:, :Cout].astype(jnp.float32)                      # [N*HQ, Cout]
    s = sub[:, :Cout].astype(jnp.float32)
    x1 = jnp.maximum(p * scale1 + shift1, 0.0)
    x2 = jnp.maximum(s * scale2 + shift2, 0.0)
    out = jnp.maximum(x1 + x2, 0.0).reshape(N, H2, W2, Cout)
    return jnp.transpose(out, (0, 3, 1, 2))                       # NCHW


def reference_forward(x_nchw, params, eps=1e-5):
    """Pure-JAX reference mirroring the PyTorch forward (train-mode BN)."""
    def conv(x, w, b, stride):
        y = jax.lax.conv_general_dilated(
            x, w, window_strides=(stride, stride), padding=((1, 1), (1, 1)),
            dimension_numbers=("NCHW", "OIHW", "NCHW"),
            precision=jax.lax.Precision.HIGHEST)
        return y + b[None, :, None, None]

    def bn_relu(y, g, be):
        mu = jnp.mean(y, axis=(0, 2, 3), keepdims=True)
        var = jnp.mean((y - mu) ** 2, axis=(0, 2, 3), keepdims=True)
        yn = (y - mu) * jax.lax.rsqrt(var + eps)
        return jax.nn.relu(yn * g[None, :, None, None] + be[None, :, None, None])

    y1 = conv(x_nchw, params["w1"], params["b1"], 1)
    y1 = jax.lax.reduce_window(y1, -jnp.inf, jax.lax.max,
                               (1, 1, 2, 2), (1, 1, 2, 2), "VALID")
    x_out = bn_relu(y1, params["gamma1"], params["beta1"])
    y2 = conv(x_nchw, params["w2"], params["b2"], 2)
    res = bn_relu(y2, params["gamma2"], params["beta2"])
    return jax.nn.relu(res + x_out)


if __name__ == "__main__":
    key = jax.random.PRNGKey(0)
    k1, k2, k3, k4, kx = jax.random.split(key, 5)

    N, Cin, H, W = 2, 4, 16, 16
    Cout = 8

    params = {
        "w1": 0.2 * jax.random.normal(k1, (Cout, Cin, 3, 3), jnp.float32),
        "b1": 0.1 * jax.random.normal(k2, (Cout,), jnp.float32),
        "w2": 0.2 * jax.random.normal(k3, (Cout, Cin, 3, 3), jnp.float32),
        "b2": 0.1 * jax.random.normal(k4, (Cout,), jnp.float32),
        # nn.BatchNorm2d default init: weight=1, bias=0
        "gamma1": jnp.ones((Cout,), jnp.float32),
        "beta1": jnp.zeros((Cout,), jnp.float32),
        "gamma2": jnp.ones((Cout,), jnp.float32),
        "beta2": jnp.zeros((Cout,), jnp.float32),
    }

    x = jax.random.normal(kx, (N, Cin, H, W), jnp.float32)

    y = custom_basic_block(x, params)
    jax.block_until_ready(y)

    y_ref = reference_forward(x, params)
    assert y.shape == y_ref.shape == (N, Cout, H // 2, W // 2)
    err = float(jnp.max(jnp.abs(y - y_ref)))
    assert err < 5e-2, err

    print("KERNEL_OK")
</pallas_src>

<mosaic_0001>
module attributes {stable_mosaic.version = 11 : i64} {
  func.func @conv_pool_stats_kernel(%arg0: i32, %arg1: memref<1x512x128xbf16, #tpu.memory_space<vmem>>, %arg2: memref<128x256xbf16, #tpu.memory_space<vmem>>, %arg3: memref<128x128xbf16, #tpu.memory_space<vmem>>, %arg4: memref<128x128xbf16, #tpu.memory_space<vmem>>, %arg5: memref<1x8x128xf32, #tpu.memory_space<vmem>>) attributes {dimension_semantics = [#tpu.dimension_semantics<parallel>], iteration_bounds = array<i64: 1>, scalar_prefetch = 0 : i64, scratch_operands = 0 : i64, tpu.core_type = #tpu.core_type<tc>, window_params = [{transform_indices = @transform_0, window_bounds = array<i64: 1, 512, 128>}, {pipeline_mode = #tpu.pipeline_mode<synchronous>, transform_indices = @transform_1, window_bounds = array<i64: 128, 256>}, {transform_indices = @transform_2, window_bounds = array<i64: 128, 128>}, {transform_indices = @transform_3, window_bounds = array<i64: 128, 128>}, {transform_indices = @transform_4, window_bounds = array<i64: 1, 8, 128>}]} {
    %c0 = arith.constant 0 : index
    %c0_0 = arith.constant 0 : index
    %c0_1 = arith.constant 0 : index
    %0 = vector.load %arg1[%c0, %c0_0, %c0_1] : memref<1x512x128xbf16, #tpu.memory_space<vmem>>, vector<1x512x128xbf16>
    %1 = vector.shape_cast %0 : vector<1x512x128xbf16> to vector<512x128xbf16>
    %c0_2 = arith.constant 0 : index
    %c0_3 = arith.constant 0 : index
    %2 = vector.load %arg2[%c0_2, %c0_3] : memref<128x256xbf16, #tpu.memory_space<vmem>>, vector<128x256xbf16>
    %cst = arith.constant dense<0.000000e+00> : vector<512x256xf32>
    %3 = tpu.matmul %1, %2, %cst {dimension_numbers = #tpu.dot_dimension_numbers<[1], [0], [0], [1], [0, 0, 1, 1], [], []>} : vector<512x128xbf16>, vector<128x256xbf16>, vector<512x256xf32> -> vector<512x256xf32>
    %4 = vector.extract_strided_slice %3 {offsets = [0, 0], sizes = [128, 256], strides = [1, 1]} : vector<512x256xf32> to vector<128x256xf32>
    %5 = vector.extract_strided_slice %3 {offsets = [128, 0], sizes = [128, 256], strides = [1, 1]} : vector<512x256xf32> to vector<128x256xf32>
    %6 = vector.extract_strided_slice %3 {offsets = [256, 0], sizes = [128, 256], strides = [1, 1]} : vector<512x256xf32> to vector<128x256xf32>
    %7 = vector.extract_strided_slice %3 {offsets = [384, 0], sizes = [128, 256], strides = [1, 1]} : vector<512x256xf32> to vector<128x256xf32>
    %8 = vector.extract_strided_slice %4 {offsets = [0, 0], sizes = [128, 128], strides = [1, 1]} : vector<128x256xf32> to vector<128x128xf32>
    %9 = vector.extract_strided_slice %5 {offsets = [0, 0], sizes = [128, 128], strides = [1, 1]} : vector<128x256xf32> to vector<128x128xf32>
    %10 = arith.maximumf %8, %9 : vector<128x128xf32>
    %11 = vector.extract_strided_slice %6 {offsets = [0, 0], sizes = [128, 128], strides = [1, 1]} : vector<128x256xf32> to vector<128x128xf32>
    %12 = vector.extract_strided_slice %7 {offsets = [0, 0], sizes = [128, 128], strides = [1, 1]} : vector<128x256xf32> to vector<128x128xf32>
    %13 = arith.maximumf %11, %12 : vector<128x128xf32>
    %14 = arith.maximumf %10, %13 : vector<128x128xf32>
    %15 = vector.extract_strided_slice %4 {offsets = [0, 128], sizes = [128, 128], strides = [1, 1]} : vector<128x256xf32> to vector<128x128xf32>
    %cst_4 = arith.constant dense<0.000000e+00> : vector<128xf32>
    %16 = vector.multi_reduction <add>, %14, %cst_4 [0] : vector<128x128xf32> to vector<128xf32>
    %17 = vector.shape_cast %16 : vector<128xf32> to vector<1x128xf32>
    %18 = arith.mulf %14, %14 : vector<128x128xf32>
    %cst_5 = arith.constant dense<0.000000e+00> : vector<128xf32>
    %19 = vector.multi_reduction <add>, %18, %cst_5 [0] : vector<128x128xf32> to vector<128xf32>
    %20 = vector.shape_cast %19 : vector<128xf32> to vector<1x128xf32>
    %cst_6 = arith.constant dense<0.000000e+00> : vector<128xf32>
    %21 = vector.multi_reduction <add>, %15, %cst_6 [0] : vector<128x128xf32> to vector<128xf32>
    %22 = vector.shape_cast %21 : vector<128xf32> to vector<1x128xf32>
    %23 = arith.mulf %15, %15 : vector<128x128xf32>
    %cst_7 = arith.constant dense<0.000000e+00> : vector<128xf32>
    %24 = vector.multi_reduction <add>, %23, %cst_7 [0] : vector<128x128xf32> to vector<128xf32>
    %25 = vector.shape_cast %24 : vector<128xf32> to vector<1x128xf32>
    %cst_8 = arith.constant 0.000000e+00 : f32
    %26 = vector.broadcast %cst_8 : f32 to vector<4x128xf32>
    %27 = tpu.concatenate %17, %20, %22, %25, %26 in 0 : vector<1x128xf32>, vector<1x128xf32>, vector<1x128xf32>, vector<1x128xf32>, vector<4x128xf32> -> vector<8x128xf32>
    %c0_9 = arith.constant 0 : index
    %c0_10 = arith.constant 0 : index
    %c0_11 = arith.constant 0 : index
    %28 = vector.load %arg5[%c0_9, %c0_10, %c0_11] : memref<1x8x128xf32, #tpu.memory_space<vmem>>, vector<1x8x128xf32>
    %29 = vector.shape_cast %28 : vector<1x8x128xf32> to vector<8x128xf32>
    %30 = vector.shape_cast %27 : vector<8x128xf32> to vector<1x8x128xf32>
    tpu.vector_store %arg5[%c0_9, %c0_10, %c0_11], %30 {strides = array<i32>} : memref<1x8x128xf32, #tpu.memory_space<vmem>>, vector<1x8x128xf32>,
    %31 = arith.truncf %14 : vector<128x128xf32> to vector<128x128xbf16>
    %c0_12 = arith.constant 0 : index
    %c0_13 = arith.constant 0 : index
    %32 = vector.load %arg3[%c0_12, %c0_13] : memref<128x128xbf16, #tpu.memory_space<vmem>>, vector<128x128xbf16>
    tpu.vector_store %arg3[%c0_12, %c0_13], %31 {strides = array<i32>} : memref<128x128xbf16, #tpu.memory_space<vmem>>, vector<128x128xbf16>,
    %33 = arith.truncf %15 : vector<128x128xf32> to vector<128x128xbf16>
    %c0_14 = arith.constant 0 : index
    %c0_15 = arith.constant 0 : index
    %34 = vector.load %arg4[%c0_14, %c0_15] : memref<128x128xbf16, #tpu.memory_space<vmem>>, vector<128x128xbf16>
    tpu.vector_store %arg4[%c0_14, %c0_15], %33 {strides = array<i32>} : memref<128x128xbf16, #tpu.memory_space<vmem>>, vector<128x128xbf16>,
    return
  }
  func.func @transform_0(%arg0: i32) -> (i32, i32, i32) {
    %c0_i32 = arith.constant 0 : i32
    %c0_i32_0 = arith.constant 0 : i32
    %c0_i32_1 = arith.constant 0 : i32
    return %arg0, %c0_i32, %c0_i32_0 : i32, i32, i32
  }
  func.func @transform_1(%arg0: i32) -> (i32, i32) {
    %c0_i32 = arith.constant 0 : i32
    %c0_i32_0 = arith.constant 0 : i32
    %c0_i32_1 = arith.constant 0 : i32
    return %c0_i32, %c0_i32_0 : i32, i32
  }
  func.func @transform_2(%arg0: i32) -> (i32, i32) {
    %c0_i32 = arith.constant 0 : i32
    %c0_i32_0 = arith.constant 0 : i32
    return %arg0, %c0_i32 : i32, i32
  }
  func.func @transform_3(%arg0: i32) -> (i32, i32) {
    %c0_i32 = arith.constant 0 : i32
    %c0_i32_0 = arith.constant 0 : i32
    return %arg0, %c0_i32 : i32, i32
  }
  func.func @transform_4(%arg0: i32) -> (i32, i32, i32) {
    %c0_i32 = arith.constant 0 : i32
    %c0_i32_0 = arith.constant 0 : i32
    %c0_i32_1 = arith.constant 0 : i32
    return %arg0, %c0_i32, %c0_i32_0 : i32, i32, i32
  }
}

</mosaic_0001>

<llo_original>
// kernel: tpu_custom_call.1
$region0: #{tpu_custom_call.1}
  #allocation0 [shape = 'u32[]', space=smem, size = 0x4, offset = 0x4, fixed_abs, tag = 'smem constant byte address 0x4 - core index']
  #allocation1 [shape = 'u32[144,128]{1,0:T(1,128)}', space=vmem, size = 0x12000, scoped, tag = 'internal scratch']
  %s0 = inlined_call_operand.hbm [shape: bf16[1,512,128], index: 0, kind: input, shape index: {}]
  %s1 = inlined_call_operand.hbm [shape: bf16[128,256], index: 1, kind: input, shape index: {}]
  %s2 = inlined_call_operand.hbm [shape: bf16[128,128], index: 2, kind: output, shape index: {0}]
  %s3 = inlined_call_operand.hbm [shape: bf16[128,128], index: 3, kind: output, shape index: {1}]
  %s4 = inlined_call_operand.hbm [shape: f32[1,8,128], index: 4, kind: output, shape index: {2}]
  %5 = xla_tuple %s2, %s3, %s4
  %s6 = sld [smem:[#allocation0]]
  $region42: #{tpu_custom_call.1} parent=0
    _
  %s8 = ssub.s32 1, %s6
  %s9 = scalar_select 0, %s8, %s6
  $region1: #{tpu_custom_call.1} parent=0
    #allocation2 [shape = 'u8[131072]{0}', space=vmem, size = 0x20000, scoped, tag = 'input window, operand 0, single buffered']
    #allocation3 [shape = 's32[1]{0}', space=sflag, size = 0x4, scoped, tag = 'scoped memory for tpu_custom_call.1']
    #allocation4 [shape = 's32[1]{0}', space=sflag, size = 0x4, scoped, tag = 'scoped memory for tpu_custom_call.1']
    #allocation5 [shape = 'u8[65536]{0}', space=vmem, size = 0x10000, scoped, tag = 'input window, operand 1, single buffered']
    #allocation6 [shape = 's32[1]{0}', space=sflag, size = 0x4, scoped, tag = 'scoped memory for tpu_custom_call.1']
    #allocation7 [shape = 'u8[32768]{0}', space=vmem, size = 0x8000, scoped, tag = 'output window, operand 0, single buffered']
    #allocation8 [shape = 'u8[32768]{0}', space=vmem, size = 0x8000, scoped, tag = 'output window, operand 1, single buffered']
    #allocation9 [shape = 's32[1]{0}', space=sflag, size = 0x4, scoped, tag = 'scoped memory for tpu_custom_call.1']
    #allocation10 [shape = 'u8[4096]{0}', space=vmem, size = 0x1000, scoped, tag = 'output window, operand 2, single buffered']
    %10 = vsyncpa [#allocation3], 0
    %11 = vsyncpa [#allocation6], 0
    %12 = vsyncpa [#allocation4], 0
    %13 = vsyncpa [#allocation9], 0
    // Predicated region
    $region2: #{tpu_custom_call.1} parent=1 // pred_check
      _
    $region3: #{tpu_custom_call.1} parent=1 // pred_check_branch
      %15 = sbr.rel (0) target = $region5
    $region4: #{tpu_custom_call.1} parent=1 // pred_region
      %s17 = ssub.s32 4096, 4096
      %18 = vsyncadd [#allocation3], %s17
      %s19 = sshll.u32 [#allocation2], 4
      %s20 = int_to_ptr.vmem [resolvable:$true] %s19
      %25 = dma.hbm_to_vmem [thread:$0]  %s0, 4096, %s20, [#allocation3], 64, 64, 4
    $region5: #{tpu_custom_call.1} parent=1 // pred_fallthru
      _
    // Predicated region
    $region6: #{tpu_custom_call.1} parent=1 // pred_check
      _
    $region7: #{tpu_custom_call.1} parent=1 // pred_check_branch
      %27 = sbr.rel (0) target = $region9
    $region8: #{tpu_custom_call.1} parent=1 // pred_region
      %s29 = ssub.s32 2048, 2048
      %30 = vsyncadd [#allocation6], %s29
      %s31 = sshll.u32 [#allocation5], 4
      %s32 = int_to_ptr.vmem [resolvable:$true] %s31
      %37 = dma.hbm_to_vmem [thread:$0]  %s1, 2048, %s32, [#allocation6], 128, 128, 8
    $region9: #{tpu_custom_call.1} parent=1 // pred_fallthru
      _
    // Predicated region
    $region10: #{tpu_custom_call.1} parent=1 // pred_check
      _
    $region11: #{tpu_custom_call.1} parent=1 // pred_check_branch
      %39 = sbr.rel (0) target = $region13
    $region12: #{tpu_custom_call.1} parent=1 // pred_region
      %40 = dma.done [#allocation3], 4096
    $region13: #{tpu_custom_call.1} parent=1 // pred_fallthru
      _
    // Predicated region
    $region14: #{tpu_custom_call.1} parent=1 // pred_check
      _
    $region15: #{tpu_custom_call.1} parent=1 // pred_check_branch
      %42 = sbr.rel (0) target = $region17
    $region16: #{tpu_custom_call.1} parent=1 // pred_region
      %43 = dma.done [#allocation6], 2048
    $region17: #{tpu_custom_call.1} parent=1 // pred_fallthru
      _
    %v45 = vld [vmem:[#allocation2] sm:$0xf]
    %v46 = vld [vmem:[#allocation2 + $0x4] sm:$0xf]
    %v47 = vld [vmem:[#allocation2 + $0x8] sm:$0xf]
    %v48 = vld [vmem:[#allocation2 + $0xc] sm:$0xf]
    %v49 = vld [vmem:[#allocation2 + $0x10] sm:$0xf]
    %v50 = vld [vmem:[#allocation2 + $0x14] sm:$0xf]
    %v51 = vld [vmem:[#allocation2 + $0x18] sm:$0xf]
    %v52 = vld [vmem:[#allocation2 + $0x1c] sm:$0xf]
    %v53 = vld [vmem:[#allocation2 + $0x20] sm:$0xf]
    %v54 = vld [vmem:[#allocation2 + $0x24] sm:$0xf]
    %v55 = vld [vmem:[#allocation2 + $0x28] sm:$0xf]
    %v56 = vld [vmem:[#allocation2 + $0x2c] sm:$0xf]
    %v57 = vld [vmem:[#allocation2 + $0x30] sm:$0xf]
    %v58 = vld [vmem:[#allocation2 + $0x34] sm:$0xf]
    %v59 = vld [vmem:[#allocation2 + $0x38] sm:$0xf]
    %v60 = vld [vmem:[#allocation2 + $0x3c] sm:$0xf]
    %v61 = vld [vmem:[#allocation2 + $0x40] sm:$0xf]
    %v62 = vld [vmem:[#allocation2 + $0x44] sm:$0xf]
    %v63 = vld [vmem:[#allocation2 + $0x48] sm:$0xf]
    %v64 = vld [vmem:[#allocation2 + $0x4c] sm:$0xf]
    %v65 = vld [vmem:[#allocation2 + $0x50] sm:$0xf]
    %v66 = vld [vmem:[#allocation2 + $0x54] sm:$0xf]
    %v67 = vld [vmem:[#allocation2 + $0x58] sm:$0xf]
    %v68 = vld [vmem:[#allocation2 + $0x5c] sm:$0xf]
    %v69 = vld [vmem:[#allocation2 + $0x60] sm:$0xf]
    %v70 = vld [vmem:[#allocation2 + $0x64] sm:$0xf]
    %v71 = vld [vmem:[#allocation2 + $0x68] sm:$0xf]
    %v72 = vld [vmem:[#allocation2 + $0x6c] sm:$0xf]
    %v73 = vld [vmem:[#allocation2 + $0x70] sm:$0xf]
    %v74 = vld [vmem:[#allocation2 + $0x74] sm:$0xf]
    %v75 = vld [vmem:[#allocation2 + $0x78] sm:$0xf]
    %v76 = vld [vmem:[#allocation2 + $0x7c] sm:$0xf]
    %v77 = vld [vmem:[#allocation2 + $0x80] sm:$0xf]
    %v78 = vld [vmem:[#allocation2 + $0x84] sm:$0xf]
    %v79 = vld [vmem:[#allocation2 + $0x88] sm:$0xf]
    %v80 = vld [vmem:[#allocation2 + $0x8c] sm:$0xf]
    %v81 = vld [vmem:[#allocation2 + $0x90] sm:$0xf]
    %v82 = vld [vmem:[#allocation2 + $0x94] sm:$0xf]
    %v83 = vld [vmem:[#allocation2 + $0x98] sm:$0xf]
    %v84 = vld [vmem:[#allocation2 + $0x9c] sm:$0xf]
    %v85 = vld [vmem:[#allocation2 + $0xa0] sm:$0xf]
    %v86 = vld [vmem:[#allocation2 + $0xa4] sm:$0xf]
    %v87 = vld [vmem:[#allocation2 + $0xa8] sm:$0xf]
    %v88 = vld [vmem:[#allocation2 + $0xac] sm:$0xf]
    %v89 = vld [vmem:[#allocation2 + $0xb0] sm:$0xf]
    %v90 = vld [vmem:[#allocation2 + $0xb4] sm:$0xf]
    %v91 = vld [vmem:[#allocation2 + $0xb8] sm:$0xf]
    %v92 = vld [vmem:[#allocation2 + $0xbc] sm:$0xf]
    %v93 = vld [vmem:[#allocation2 + $0xc0] sm:$0xf]
    %v94 = vld [vmem:[#allocation2 + $0xc4] sm:$0xf]
    %v95 = vld [vmem:[#allocation2 + $0xc8] sm:$0xf]
    %v96 = vld [vmem:[#allocation2 + $0xcc] sm:$0xf]
    %v97 = vld [vmem:[#allocation2 + $0xd0] sm:$0xf]
    %v98 = vld [vmem:[#allocation2 + $0xd4] sm:$0xf]
    %v99 = vld [vmem:[#allocation2 + $0xd8] sm:$0xf]
    %v100 = vld [vmem:[#allocation2 + $0xdc] sm:$0xf]
    %v101 = vld [vmem:[#allocation2 + $0xe0] sm:$0xf]
    %v102 = vld [vmem:[#allocation2 + $0xe4] sm:$0xf]
    %v103 = vld [vmem:[#allocation2 + $0xe8] sm:$0xf]
    %v104 = vld [vmem:[#allocation2 + $0xec] sm:$0xf]
    %v105 = vld [vmem:[#allocation2 + $0xf0] sm:$0xf]
    %v106 = vld [vmem:[#allocation2 + $0xf4] sm:$0xf]
    %v107 = vld [vmem:[#allocation2 + $0xf8] sm:$0xf]
    %v108 = vld [vmem:[#allocation2 + $0xfc] sm:$0xf]
    %v109 = vld [vmem:[#allocation5] sm:$0xff]
    %v110 = vld [vmem:[#allocation5 + $0x8] sm:$0xff]
    %v111 = vld [vmem:[#allocation5 + $0x10] sm:$0xff]
    %v112 = vld [vmem:[#allocation5 + $0x18] sm:$0xff]
    %v113 = vld [vmem:[#allocation5 + $0x20] sm:$0xff]
    %v114 = vld [vmem:[#allocation5 + $0x28] sm:$0xff]
    %v115 = vld [vmem:[#allocation5 + $0x30] sm:$0xff]
    %v116 = vld [vmem:[#allocation5 + $0x38] sm:$0xff]
    %v117 = vld [vmem:[#allocation5 + $0x40] sm:$0xff]
    %v118 = vld [vmem:[#allocation5 + $0x48] sm:$0xff]
    %v119 = vld [vmem:[#allocation5 + $0x50] sm:$0xff]
    %v120 = vld [vmem:[#allocation5 + $0x58] sm:$0xff]
    %v121 = vld [vmem:[#allocation5 + $0x60] sm:$0xff]
    %v122 = vld [vmem:[#allocation5 + $0x68] sm:$0xff]
    %v123 = vld [vmem:[#allocation5 + $0x70] sm:$0xff]
    %v124 = vld [vmem:[#allocation5 + $0x78] sm:$0xff]
    %v189 = vunpack.c.l.b16 %v45
    %v190 = vunpack.c.l.b16 %v46
    %v191 = vunpack.c.l.b16 %v47
    %v192 = vunpack.c.l.b16 %v48
    %v193 = vunpack.c.l.b16 %v49
    %v194 = vunpack.c.l.b16 %v50
    %v195 = vunpack.c.l.b16 %v51
    %v196 = vunpack.c.l.b16 %v52
    %v197 = vunpack.c.l.b16 %v53
    %v198 = vunpack.c.l.b16 %v54
    %v199 = vunpack.c.l.b16 %v55
    %v200 = vunpack.c.l.b16 %v56
    %v201 = vunpack.c.l.b16 %v57
    %v202 = vunpack.c.l.b16 %v58
    %v203 = vunpack.c.l.b16 %v59
    %v204 = vunpack.c.l.b16 %v60
    %v205 = vunpack.c.l.b16 %v61
    %v206 = vunpack.c.l.b16 %v62
    %v207 = vunpack.c.l.b16 %v63
    %v208 = vunpack.c.l.b16 %v64
    %v209 = vunpack.c.l.b16 %v65
    %v210 = vunpack.c.l.b16 %v66
    %v211 = vunpack.c.l.b16 %v67
    %v212 = vunpack.c.l.b16 %v68
    %v213 = vunpack.c.l.b16 %v69
    %v214 = vunpack.c.l.b16 %v70
    %v215 = vunpack.c.l.b16 %v71
    %v216 = vunpack.c.l.b16 %v72
    %v217 = vunpack.c.l.b16 %v73
    %v218 = vunpack.c.l.b16 %v74
    %v219 = vunpack.c.l.b16 %v75
    %v220 = vunpack.c.l.b16 %v76
    %v221 = vunpack.c.l.b16 %v77
    %v222 = vunpack.c.l.b16 %v78
    %v223 = vunpack.c.l.b16 %v79
    %v224 = vunpack.c.l.b16 %v80
    %v225 = vunpack.c.l.b16 %v81
    %v226 = vunpack.c.l.b16 %v82
    %v227 = vunpack.c.l.b16 %v83
    %v228 = vunpack.c.l.b16 %v84
    %v229 = vunpack.c.l.b16 %v85
    %v230 = vunpack.c.l.b16 %v86
    %v231 = vunpack.c.l.b16 %v87
    %v232 = vunpack.c.l.b16 %v88
    %v233 = vunpack.c.l.b16 %v89
    %v234 = vunpack.c.l.b16 %v90
    %v235 = vunpack.c.l.b16 %v91
    %v236 = vunpack.c.l.b16 %v92
    %v237 = vunpack.c.l.b16 %v93
    %v238 = vunpack.c.l.b16 %v94
    %v239 = vunpack.c.l.b16 %v95
    %v240 = vunpack.c.l.b16 %v96
    %v241 = vunpack.c.l.b16 %v97
    %v242 = vunpack.c.l.b16 %v98
    %v243 = vunpack.c.l.b16 %v99
    %v244 = vunpack.c.l.b16 %v100
    %v245 = vunpack.c.l.b16 %v101
    %v246 = vunpack.c.l.b16 %v102
    %v247 = vunpack.c.l.b16 %v103
    %v248 = vunpack.c.l.b16 %v104
    %v249 = vunpack.c.l.b16 %v105
    %v250 = vunpack.c.l.b16 %v106
    %v251 = vunpack.c.l.b16 %v107
    %v252 = vunpack.c.l.b16 %v108
    %v253 = vpack.c.b16 %v190, %v189
    %v254 = vpack.c.b16 %v192, %v191
    %v255 = vpack.c.b16 %v194, %v193
    %v256 = vpack.c.b16 %v196, %v195
    %v257 = vpack.c.b16 %v198, %v197
    %v258 = vpack.c.b16 %v200, %v199
    %v259 = vpack.c.b16 %v202, %v201
    %v260 = vpack.c.b16 %v204, %v203
    %v261 = vpack.c.b16 %v206, %v205
    %v262 = vpack.c.b16 %v208, %v207
    %v263 = vpack.c.b16 %v210, %v209
    %v264 = vpack.c.b16 %v212, %v211
    %v265 = vpack.c.b16 %v214, %v213
    %v266 = vpack.c.b16 %v216, %v215
    %v267 = vpack.c.b16 %v218, %v217
    %v268 = vpack.c.b16 %v220, %v219
    %v269 = vpack.c.b16 %v222, %v221
    %v270 = vpack.c.b16 %v224, %v223
    %v271 = vpack.c.b16 %v226, %v225
    %v272 = vpack.c.b16 %v228, %v227
    %v273 = vpack.c.b16 %v230, %v229
    %v274 = vpack.c.b16 %v232, %v231
    %v275 = vpack.c.b16 %v234, %v233
    %v276 = vpack.c.b16 %v236, %v235
    %v277 = vpack.c.b16 %v238, %v237
    %v278 = vpack.c.b16 %v240, %v239
    %v279 = vpack.c.b16 %v242, %v241
    %v280 = vpack.c.b16 %v244, %v243
    %v281 = vpack.c.b16 %v246, %v245
    %v282 = vpack.c.b16 %v248, %v247
    %v283 = vpack.c.b16 %v250, %v249
    %v284 = vpack.c.b16 %v252, %v251
    %v333 = vunpack.c.l.b16 %v109
    %v334 = vunpack.c.h.b16 %v109
    %v335 = vunpack.c.l.b16 %v110
    %v336 = vunpack.c.h.b16 %v110
    %v337 = vunpack.c.l.b16 %v111
    %v338 = vunpack.c.h.b16 %v111
    %v339 = vunpack.c.l.b16 %v112
    %v340 = vunpack.c.h.b16 %v112
    %v341 = vunpack.c.l.b16 %v113
    %v342 = vunpack.c.h.b16 %v113
    %v343 = vunpack.c.l.b16 %v114
    %v344 = vunpack.c.h.b16 %v114
    %v345 = vunpack.c.l.b16 %v115
    %v346 = vunpack.c.h.b16 %v115
    %v347 = vunpack.c.l.b16 %v116
    %v348 = vunpack.c.h.b16 %v116
    %v349 = vunpack.c.l.b16 %v117
    %v350 = vunpack.c.h.b16 %v117
    %v351 = vunpack.c.l.b16 %v118
    %v352 = vunpack.c.h.b16 %v118
    %v353 = vunpack.c.l.b16 %v119
    %v354 = vunpack.c.h.b16 %v119
    %v355 = vunpack.c.l.b16 %v120
    %v356 = vunpack.c.h.b16 %v120
    %v357 = vunpack.c.l.b16 %v121
    %v358 = vunpack.c.h.b16 %v121
    %v359 = vunpack.c.l.b16 %v122
    %v360 = vunpack.c.h.b16 %v122
    %v361 = vunpack.c.l.b16 %v123
    %v362 = vunpack.c.h.b16 %v123
    %v363 = vunpack.c.l.b16 %v124
    %v364 = vunpack.c.h.b16 %v124
    %v365 = vpack.c.b16 %v335, %v333
    %v366 = vpack.c.b16 %v336, %v334
    %v367 = vpack.c.b16 %v339, %v337
    %v368 = vpack.c.b16 %v340, %v338
    %v369 = vpack.c.b16 %v343, %v341
    %v370 = vpack.c.b16 %v344, %v342
    %v371 = vpack.c.b16 %v347, %v345
    %v372 = vpack.c.b16 %v348, %v346
    %v373 = vpack.c.b16 %v351, %v349
    %v374 = vpack.c.b16 %v352, %v350
    %v375 = vpack.c.b16 %v355, %v353
    %v376 = vpack.c.b16 %v356, %v354
    %v377 = vpack.c.b16 %v359, %v357
    %v378 = vpack.c.b16 %v360, %v358
    %v379 = vpack.c.b16 %v363, %v361
    %v380 = vpack.c.b16 %v364, %v362
    %397 = vmatprep.subr.bf16.mxu0 %v366
    %398 = vmatpush1.bf16.msra.mxu0 %v365
    %399 = vmatprep.subr.bf16.mxu0 %v368
    %400 = vmatpush1.bf16.msra.mxu0 %v367
    %401 = vmatprep.subr.bf16.mxu0 %v370
    %402 = vmatpush1.bf16.msra.mxu0 %v369
    %403 = vmatprep.subr.bf16.mxu0 %v372
    %404 = vmatpush1.bf16.msra.mxu0 %v371
    %405 = vmatprep.subr.bf16.mxu0 %v374
    %406 = vmatpush1.bf16.msra.mxu0 %v373
    %407 = vmatprep.subr.bf16.mxu0 %v376
    %408 = vmatpush1.bf16.msra.mxu0 %v375
    %409 = vmatprep.subr.bf16.mxu0 %v378
    %410 = vmatpush1.bf16.msra.mxu0 %v377
    %411 = vmatprep.subr.bf16.mxu0 %v380
    %412 = vmatpush1.bf16.msra.mxu0 %v379
    %413 = vmatprep.subr.bf16.mxu0 0
    %414 = vmatpush1.bf16.msra.mxu0 0
    %415 = vmatprep.subr.bf16.mxu0 0
    %416 = vmatpush1.bf16.msra.mxu0 0
    %417 = vmatprep.subr.bf16.mxu0 0
    %418 = vmatpush1.bf16.msra.mxu0 0
    %419 = vmatprep.subr.bf16.mxu0 0
    %420 = vmatpush1.bf16.msra.mxu0 0
    %421 = vmatprep.subr.bf16.mxu0 0
    %422 = vmatpush1.bf16.msra.mxu0 0
    %423 = vmatprep.subr.bf16.mxu0 0
    %424 = vmatpush1.bf16.msra.mxu0 0
    %425 = vmatprep.subr.bf16.mxu0 0
    %426 = vmatpush1.bf16.msra.mxu0 0
    %427 = vmatprep.subr.bf16.mxu0 0
    %428 = vmatpush1.bf16.msra.mxu0 0
    %429 = vmatprep.mubr.bf16.mxu0 0
    %430 = vmatmul.mubr.bf16.gmra.mrb[0].mxu0 %v253
    %v431 = vpop.f32.mrb[0].mxu0
    %v432 = vadd.f32 0.0, %v431
    %v433 = vpop.f32.mrb[0].mxu0
    %v434 = vadd.f32 0.0, %v433
    %v435 = vpop.f32.mrb[0].mxu0
    %v436 = vadd.f32 0.0, %v435
    %v437 = vpop.f32.mrb[0].mxu0
    %v438 = vadd.f32 0.0, %v437
    %439 = vmatprep.mubr.bf16.mxu0 0
    %440 = vmatmul.mubr.bf16.gmra.mrb[0].mxu0 %v254
    %v441 = vpop.f32.mrb[0].mxu0
    %v442 = vadd.f32 0.0, %v441
    %v443 = vpop.f32.mrb[0].mxu0
    %v444 = vadd.f32 0.0, %v443
    %v445 = vpop.f32.mrb[0].mxu0
    %v446 = vadd.f32 0.0, %v445
    %v447 = vpop.f32.mrb[0].mxu0
    %v448 = vadd.f32 0.0, %v447
    %449 = vmatprep.mubr.bf16.mxu0 0
    %450 = vmatmul.mubr.bf16.gmra.mrb[0].mxu0 %v255
    %v451 = vpop.f32.mrb[0].mxu0
    %v452 = vadd.f32 0.0, %v451
    %v453 = vpop.f32.mrb[0].mxu0
    %v454 = vadd.f32 0.0, %v453
    %v455 = vpop.f32.mrb[0].mxu0
    %v456 = vadd.f32 0.0, %v455
    %v457 = vpop.f32.mrb[0].mxu0
    %v458 = vadd.f32 0.0, %v457
    %459 = vmatprep.mubr.bf16.mxu0 0
    %460 = vmatmul.mubr.bf16.gmra.mrb[0].mxu0 %v256
    %v461 = vpop.f32.mrb[0].mxu0
    %v462 = vadd.f32 0.0, %v461
    %v463 = vpop.f32.mrb[0].mxu0
    %v464 = vadd.f32 0.0, %v463
    %v465 = vpop.f32.mrb[0].mxu0
    %v466 = vadd.f32 0.0, %v465
    %v467 = vpop.f32.mrb[0].mxu0
    %v468 = vadd.f32 0.0, %v467
    %469 = vmatprep.mubr.bf16.mxu0 0
    %470 = vmatmul.mubr.bf16.gmra.mrb[0].mxu0 %v257
    %v471 = vpop.f32.mrb[0].mxu0
    %v472 = vadd.f32 0.0, %v471
    %v473 = vpop.f32.mrb[0].mxu0
    %v474 = vadd.f32 0.0, %v473
    %v475 = vpop.f32.mrb[0].mxu0
    %v476 = vadd.f32 0.0, %v475
    %v477 = vpop.f32.mrb[0].mxu0
    %v478 = vadd.f32 0.0, %v477
    %479 = vmatprep.mubr.bf16.mxu0 0
    %480 = vmatmul.mubr.bf16.gmra.mrb[0].mxu0 %v258
    %v481 = vpop.f32.mrb[0].mxu0
    %v482 = vadd.f32 0.0, %v481
    %v483 = vpop.f32.mrb[0].mxu0
    %v484 = vadd.f32 0.0, %v483
    %v485 = vpop.f32.mrb[0].mxu0
    %v486 = vadd.f32 0.0, %v485
    %v487 = vpop.f32.mrb[0].mxu0
    %v488 = vadd.f32 0.0, %v487
    %489 = vmatprep.mubr.bf16.mxu0 0
    %490 = vmatmul.mubr.bf16.gmra.mrb[0].mxu0 %v259
    %v491 = vpop.f32.mrb[0].mxu0
    %v492 = vadd.f32 0.0, %v491
    %v493 = vpop.f32.mrb[0].mxu0
    %v494 = vadd.f32 0.0, %v493
    %v495 = vpop.f32.mrb[0].mxu0
    %v496 = vadd.f32 0.0, %v495
    %v497 = vpop.f32.mrb[0].mxu0
    %v498 = vadd.f32 0.0, %v497
    %499 = vmatprep.mubr.bf16.mxu0 0
    %500 = vmatmul.mubr.bf16.gmra.mrb[0].mxu0 %v260
    %v501 = vpop.f32.mrb[0].mxu0
    %v502 = vadd.f32 0.0, %v501
    %v503 = vpop.f32.mrb[0].mxu0
    %v504 = vadd.f32 0.0, %v503
    %v505 = vpop.f32.mrb[0].mxu0
    %v506 = vadd.f32 0.0, %v505
    %v507 = vpop.f32.mrb[0].mxu0
    %v508 = vadd.f32 0.0, %v507
    %509 = vmatprep.mubr.bf16.mxu0 0
    %510 = vmatmul.mubr.bf16.gmra.mrb[0].mxu0 %v261
    %v511 = vpop.f32.mrb[0].mxu0
    %v512 = vadd.f32 0.0, %v511
    %v513 = vpop.f32.mrb[0].mxu0
    %v514 = vpop.f32.mrb[0].mxu0
    %v515 = vadd.f32 0.0, %v514
    %v516 = vpop.f32.mrb[0].mxu0
    %517 = vmatprep.mubr.bf16.mxu0 0
    %518 = vmatmul.mubr.bf16.gmra.mrb[0].mxu0 %v262
    %v519 = vpop.f32.mrb[0].mxu0
    %v520 = vadd.f32 0.0, %v519
    %v521 = vpop.f32.mrb[0].mxu0
    %v522 = vpop.f32.mrb[0].mxu0
    %v523 = vadd.f32 0.0, %v522
    %v524 = vpop.f32.mrb[0].mxu0
    %525 = vmatprep.mubr.bf16.mxu0 0
    %526 = vmatmul.mubr.bf16.gmra.mrb[0].mxu0 %v263
    %v527 = vpop.f32.mrb[0].mxu0
    %v528 = vadd.f32 0.0, %v527
    %v529 = vpop.f32.mrb[0].mxu0
    %v530 = vpop.f32.mrb[0].mxu0
    %v531 = vadd.f32 0.0, %v530
    %v532 = vpop.f32.mrb[0].mxu0
    %533 = vmatprep.mubr.bf16.mxu0 0
    %534 = vmatmul.mubr.bf16.gmra.mrb[0].mxu0 %v264
    %v535 = vpop.f32.mrb[0].mxu0
    %v536 = vadd.f32 0.0, %v535
    %v537 = vpop.f32.mrb[0].mxu0
    %v538 = vpop.f32.mrb[0].mxu0
    %v539 = vadd.f32 0.0, %v538
    %v540 = vpop.f32.mrb[0].mxu0
    %541 = vmatprep.mubr.bf16.mxu0 0
    %542 = vmatmul.mubr.bf16.gmra.mrb[0].mxu0 %v265
    %v543 = vpop.f32.mrb[0].mxu0
    %v544 = vadd.f32 0.0, %v543
    %v545 = vpop.f32.mrb[0].mxu0
    %v546 = vpop.f32.mrb[0].mxu0
    %v547 = vadd.f32 0.0, %v546
    %v548 = vpop.f32.mrb[0].mxu0
    %549 = vmatprep.mubr.bf16.mxu0 0
    %550 = vmatmul.mubr.bf16.gmra.mrb[0].mxu0 %v266
    %v551 = vpop.f32.mrb[0].mxu0
    %v552 = vadd.f32 0.0, %v551
    %v553 = vpop.f32.mrb[0].mxu0
    %v554 = vpop.f32.mrb[0].mxu0
    %v555 = vadd.f32 0.0, %v554
    %v556 = vpop.f32.mrb[0].mxu0
    %557 = vmatprep.mubr.bf16.mxu0 0
    %558 = vmatmul.mubr.bf16.gmra.mrb[0].mxu0 %v267
    %v559 = vpop.f32.mrb[0].mxu0
    %v560 = vadd.f32 0.0, %v559
    %v561 = vpop.f32.mrb[0].mxu0
    %v562 = vpop.f32.mrb[0].mxu0
    %v563 = vadd.f32 0.0, %v562
    %v564 = vpop.f32.mrb[0].mxu0
    %565 = vmatprep.mubr.bf16.mxu0 0
    %566 = vmatmul.mubr.bf16.gmra.mrb[0].mxu0 %v268
    %v567 = vpop.f32.mrb[0].mxu0
    %v568 = vadd.f32 0.0, %v567
    %v569 = vpop.f32.mrb[0].mxu0
    %v570 = vpop.f32.mrb[0].mxu0
    %v571 = vadd.f32 0.0, %v570
    %v572 = vpop.f32.mrb[0].mxu0
    %573 = vmatprep.mubr.bf16.mxu0 0
    %574 = vmatmul.mubr.bf16.gmra.mrb[0].mxu0 %v269
    %v575 = vpop.f32.mrb[0].mxu0
    %v576 = vadd.f32 0.0, %v575
    %v577 = vpop.f32.mrb[0].mxu0
    %v578 = vpop.f32.mrb[0].mxu0
    %v579 = vadd.f32 0.0, %v578
    %v580 = vpop.f32.mrb[0].mxu0
    %581 = vmatprep.mubr.bf16.mxu0 0
    %582 = vmatmul.mubr.bf16.gmra.mrb[0].mxu0 %v270
    %v583 = vpop.f32.mrb[0].mxu0
    %v584 = vadd.f32 0.0, %v583
    %v585 = vpop.f32.mrb[0].mxu0
    %v586 = vpop.f32.mrb[0].mxu0
    %v587 = vadd.f32 0.0, %v586
    %v588 = vpop.f32.mrb[0].mxu0
    %589 = vmatprep.mubr.bf16.mxu0 0
    %590 = vmatmul.mubr.bf16.gmra.mrb[0].mxu0 %v271
    %v591 = vpop.f32.mrb[0].mxu0
    %v592 = vadd.f32 0.0, %v591
    %v593 = vpop.f32.mrb[0].mxu0
    %v594 = vpop.f32.mrb[0].mxu0
    %v595 = vadd.f32 0.0, %v594
    %v596 = vpop.f32.mrb[0].mxu0
    %597 = vmatprep.mubr.bf16.mxu0 0
    %598 = vmatmul.mubr.bf16.gmra.mrb[0].mxu0 %v272
    %v599 = vpop.f32.mrb[0].mxu0
    %v600 = vadd.f32 0.0, %v599
    %v601 = vpop.f32.mrb[0].mxu0
    %v602 = vpop.f32.mrb[0].mxu0
    %v603 = vadd.f32 0.0, %v602
    %v604 = vpop.f32.mrb[0].mxu0
    %605 = vmatprep.mubr.bf16.mxu0 0
    %606 = vmatmul.mubr.bf16.gmra.mrb[0].mxu0 %v273
    %v607 = vpop.f32.mrb[0].mxu0
    %v608 = vadd.f32 0.0, %v607
    %v609 = vpop.f32.mrb[0].mxu0
    %v610 = vpop.f32.mrb[0].mxu0
    %v611 = vadd.f32 0.0, %v610
    %v612 = vpop.f32.mrb[0].mxu0
    %613 = vmatprep.mubr.bf16.mxu0 0
    %614 = vmatmul.mubr.bf16.gmra.mrb[0].mxu0 %v274
    %v615 = vpop.f32.mrb[0].mxu0
    %v616 = vadd.f32 0.0, %v615
    %v617 = vpop.f32.mrb[0].mxu0
    %v618 = vpop.f32.mrb[0].mxu0
    %v619 = vadd.f32 0.0, %v618
    %v620 = vpop.f32.mrb[0].mxu0
    %621 = vmatprep.mubr.bf16.mxu0 0
    %622 = vmatmul.mubr.bf16.gmra.mrb[0].mxu0 %v275
    %v623 = vpop.f32.mrb[0].mxu0
    %v624 = vadd.f32 0.0, %v623
    %v625 = vpop.f32.mrb[0].mxu0
    %v626 = vpop.f32.mrb[0].mxu0
    %v627 = vadd.f32 0.0, %v626
    %v628 = vpop.f32.mrb[0].mxu0
    %629 = vmatprep.mubr.bf16.mxu0 0
    %630 = vmatmul.mubr.bf16.gmra.mrb[0].mxu0 %v276
    %v631 = vpop.f32.mrb[0].mxu0
    %v632 = vadd.f32 0.0, %v631
    %v633 = vpop.f32.mrb[0].mxu0
    %v634 = vpop.f32.mrb[0].mxu0
    %v635 = vadd.f32 0.0, %v634
    %v636 = vpop.f32.mrb[0].mxu0
    %637 = vmatprep.mubr.bf16.mxu0 0
    %638 = vmatmul.mubr.bf16.gmra.mrb[0].mxu0 %v277
    %v639 = vpop.f32.mrb[0].mxu0
    %v640 = vadd.f32 0.0, %v639
    %v641 = vpop.f32.mrb[0].mxu0
    %v642 = vpop.f32.mrb[0].mxu0
    %v643 = vadd.f32 0.0, %v642
    %v644 = vpop.f32.mrb[0].mxu0
    %645 = vmatprep.mubr.bf16.mxu0 0
    %646 = vmatmul.mubr.bf16.gmra.mrb[0].mxu0 %v278
    %v647 = vpop.f32.mrb[0].mxu0
    %v648 = vadd.f32 0.0, %v647
    %v649 = vpop.f32.mrb[0].mxu0
    %v650 = vpop.f32.mrb[0].mxu0
    %v651 = vadd.f32 0.0, %v650
    %v652 = vpop.f32.mrb[0].mxu0
    %653 = vmatprep.mubr.bf16.mxu0 0
    %654 = vmatmul.mubr.bf16.gmra.mrb[0].mxu0 %v279
    %v655 = vpop.f32.mrb[0].mxu0
    %v656 = vadd.f32 0.0, %v655
    %v657 = vpop.f32.mrb[0].mxu0
    %v658 = vpop.f32.mrb[0].mxu0
    %v659 = vadd.f32 0.0, %v658
    %v660 = vpop.f32.mrb[0].mxu0
    %661 = vmatprep.mubr.bf16.mxu0 0
    %662 = vmatmul.mubr.bf16.gmra.mrb[0].mxu0 %v280
    %v663 = vpop.f32.mrb[0].mxu0
    %v664 = vadd.f32 0.0, %v663
    %v665 = vpop.f32.mrb[0].mxu0
    %v666 = vpop.f32.mrb[0].mxu0
    %v667 = vadd.f32 0.0, %v666
    %v668 = vpop.f32.mrb[0].mxu0
    %669 = vmatprep.mubr.bf16.mxu0 0
    %670 = vmatmul.mubr.bf16.gmra.mrb[0].mxu0 %v281
    %v671 = vpop.f32.mrb[0].mxu0
    %v672 = vadd.f32 0.0, %v671
    %v673 = vpop.f32.mrb[0].mxu0
    %v674 = vpop.f32.mrb[0].mxu0
    %v675 = vadd.f32 0.0, %v674
    %v676 = vpop.f32.mrb[0].mxu0
    %677 = vmatprep.mubr.bf16.mxu0 0
    %678 = vmatmul.mubr.bf16.gmra.mrb[0].mxu0 %v282
    %v679 = vpop.f32.mrb[0].mxu0
    %v680 = vadd.f32 0.0, %v679
    %v681 = vpop.f32.mrb[0].mxu0
    %v682 = vpop.f32.mrb[0].mxu0
    %v683 = vadd.f32 0.0, %v682
    %v684 = vpop.f32.mrb[0].mxu0
    %685 = vmatprep.mubr.bf16.mxu0 0
    %686 = vmatmul.mubr.bf16.gmra.mrb[0].mxu0 %v283
    %v687 = vpop.f32.mrb[0].mxu0
    %v688 = vadd.f32 0.0, %v687
    %v689 = vpop.f32.mrb[0].mxu0
    %v690 = vpop.f32.mrb[0].mxu0
    %v691 = vadd.f32 0.0, %v690
    %v692 = vpop.f32.mrb[0].mxu0
    %693 = vmatprep.mubr.bf16.mxu0 0
    %694 = vmatmul.mubr.bf16.gmra.mrb[0].mxu0 %v284
    %v695 = vpop.f32.mrb[0].mxu0
    %v696 = vadd.f32 0.0, %v695
    %v697 = vpop.f32.mrb[0].mxu0
    %v698 = vpop.f32.mrb[0].mxu0
    %v699 = vadd.f32 0.0, %v698
    %v700 = vpop.f32.mrb[0].mxu0
    %701 = vdwg.mxu0
    %v702 = vmax.f32 %v432, %v512
    %v703 = vmax.f32 %v436, %v515
    %v704 = vmax.f32 %v442, %v520
    %v705 = vmax.f32 %v446, %v523
    %v706 = vmax.f32 %v452, %v528
    %v707 = vmax.f32 %v456, %v531
    %v708 = vmax.f32 %v462, %v536
    %v709 = vmax.f32 %v466, %v539
    %v710 = vmax.f32 %v472, %v544
    %v711 = vmax.f32 %v476, %v547
    %v712 = vmax.f32 %v482, %v552
    %v713 = vmax.f32 %v486, %v555
    %v714 = vmax.f32 %v492, %v560
    %v715 = vmax.f32 %v496, %v563
    %v716 = vmax.f32 %v502, %v568
    %v717 = vmax.f32 %v506, %v571
    %v718 = vmax.f32 %v576, %v640
    %v719 = vmax.f32 %v579, %v643
    %v720 = vmax.f32 %v584, %v648
    %v721 = vmax.f32 %v587, %v651
    %v722 = vmax.f32 %v592, %v656
    %v723 = vmax.f32 %v595, %v659
    %v724 = vmax.f32 %v600, %v664
    %v725 = vmax.f32 %v603, %v667
    %v726 = vmax.f32 %v608, %v672
    %v727 = vmax.f32 %v611, %v675
    %v728 = vmax.f32 %v616, %v680
    %v729 = vmax.f32 %v619, %v683
    %v730 = vmax.f32 %v624, %v688
    %v731 = vmax.f32 %v627, %v691
    %v732 = vmax.f32 %v632, %v696
    %v733 = vmax.f32 %v635, %v699
    %v734 = vmax.f32 %v702, %v718
    %v735 = vmax.f32 %v703, %v719
    %v736 = vmax.f32 %v704, %v720
    %v737 = vmax.f32 %v705, %v721
    %v738 = vmax.f32 %v706, %v722
    %v739 = vmax.f32 %v707, %v723
    %v740 = vmax.f32 %v708, %v724
    %v741 = vmax.f32 %v709, %v725
    %v742 = vmax.f32 %v710, %v726
    %v743 = vmax.f32 %v711, %v727
    %v744 = vmax.f32 %v712, %v728
    %v745 = vmax.f32 %v713, %v729
    %v746 = vmax.f32 %v714, %v730
    %v747 = vmax.f32 %v715, %v731
    %v748 = vmax.f32 %v716, %v732
    %v749 = vmax.f32 %v717, %v733
    %v750 = vadd.f32 %v734, %v735
    %v751 = vadd.f32 %v750, %v736
    %v752 = vadd.f32 %v751, %v737
    %v753 = vadd.f32 %v752, %v738
    %v754 = vadd.f32 %v753, %v739
    %v755 = vadd.f32 %v754, %v740
    %v756 = vadd.f32 %v755, %v741
    %v757 = vadd.f32 %v756, %v742
    %v758 = vadd.f32 %v757, %v743
    %v759 = vadd.f32 %v758, %v744
    %v760 = vadd.f32 %v759, %v745
    %v761 = vadd.f32 %v760, %v746
    %v762 = vadd.f32 %v761, %v747
    %v763 = vadd.f32 %v762, %v748
    %v764 = vadd.f32 %v763, %v749
    %v765 = vrot.slane %v764, 4
    %v766 = vadd.f32 %v764, %v765
    %v767 = vrot.slane %v766, 2
    %v768 = vadd.f32 %v766, %v767
    %v769 = vrot.slane %v768, 1
    %v770 = vadd.f32 %v768, %v769
    %v771 = vmul.f32 %v734, %v734
    %v772 = vmul.f32 %v735, %v735
    %v773 = vmul.f32 %v736, %v736
    %v774 = vmul.f32 %v737, %v737
    %v775 = vmul.f32 %v738, %v738
    %v776 = vmul.f32 %v739, %v739
    %v777 = vmul.f32 %v740, %v740
    %v778 = vmul.f32 %v741, %v741
    %v779 = vmul.f32 %v742, %v742
    %v780 = vmul.f32 %v743, %v743
    %v781 = vmul.f32 %v744, %v744
    %v782 = vmul.f32 %v745, %v745
    %v783 = vmul.f32 %v746, %v746
    %v784 = vmul.f32 %v747, %v747
    %v785 = vmul.f32 %v748, %v748
    %v786 = vmul.f32 %v749, %v749
    %v787 = vadd.f32 %v771, %v772
    %v788 = vadd.f32 %v787, %v773
    %v789 = vadd.f32 %v788, %v774
    %v790 = vadd.f32 %v789, %v775
    %v791 = vadd.f32 %v790, %v776
    %v792 = vadd.f32 %v791, %v777
    %v793 = vadd.f32 %v792, %v778
    %v794 = vadd.f32 %v793, %v779
    %v795 = vadd.f32 %v794, %v780
    %v796 = vadd.f32 %v795, %v781
    %v797 = vadd.f32 %v796, %v782
    %v798 = vadd.f32 %v797, %v783
    %v799 = vadd.f32 %v798, %v784
    %v800 = vadd.f32 %v799, %v785
    %v801 = vadd.f32 %v800, %v786
    %v802 = vrot.slane %v801, 4
    %v803 = vadd.f32 %v801, %v802
    %v804 = vrot.slane %v803, 2
    %v805 = vadd.f32 %v803, %v804
    %v806 = vrot.slane %v805, 1
    %v807 = vadd.f32 %v805, %v806
    %v808 = vadd.f32 %v434, %v438
    %v809 = vadd.f32 %v808, %v444
    %v810 = vadd.f32 %v809, %v448
    %v811 = vadd.f32 %v810, %v454
    %v812 = vadd.f32 %v811, %v458
    %v813 = vadd.f32 %v812, %v464
    %v814 = vadd.f32 %v813, %v468
    %v815 = vadd.f32 %v814, %v474
    %v816 = vadd.f32 %v815, %v478
    %v817 = vadd.f32 %v816, %v484
    %v818 = vadd.f32 %v817, %v488
    %v819 = vadd.f32 %v818, %v494
    %v820 = vadd.f32 %v819, %v498
    %v821 = vadd.f32 %v820, %v504
    %v822 = vadd.f32 %v821, %v508
    %v823 = vrot.slane %v822, 4
    %v824 = vadd.f32 %v822, %v823
    %v825 = vrot.slane %v824, 2
    %v826 = vadd.f32 %v824, %v825
    %v827 = vrot.slane %v826, 1
    %v828 = vadd.f32 %v826, %v827
    %v829 = vmul.f32 %v434, %v434
    %v830 = vmul.f32 %v438, %v438
    %v831 = vmul.f32 %v444, %v444
    %v832 = vmul.f32 %v448, %v448
    %v833 = vmul.f32 %v454, %v454
    %v834 = vmul.f32 %v458, %v458
    %v835 = vmul.f32 %v464, %v464
    %v836 = vmul.f32 %v468, %v468
    %v837 = vmul.f32 %v474, %v474
    %v838 = vmul.f32 %v478, %v478
    %v839 = vmul.f32 %v484, %v484
    %v840 = vmul.f32 %v488, %v488
    %v841 = vmul.f32 %v494, %v494
    %v842 = vmul.f32 %v498, %v498
    %v843 = vmul.f32 %v504, %v504
    %v844 = vmul.f32 %v508, %v508
    %v845 = vadd.f32 %v829, %v830
    %v846 = vadd.f32 %v845, %v831
    %v847 = vadd.f32 %v846, %v832
    %v848 = vadd.f32 %v847, %v833
    %v849 = vadd.f32 %v848, %v834
    %v850 = vadd.f32 %v849, %v835
    %v851 = vadd.f32 %v850, %v836
    %v852 = vadd.f32 %v851, %v837
    %v853 = vadd.f32 %v852, %v838
    %v854 = vadd.f32 %v853, %v839
    %v855 = vadd.f32 %v854, %v840
    %v856 = vadd.f32 %v855, %v841
    %v857 = vadd.f32 %v856, %v842
    %v858 = vadd.f32 %v857, %v843
    %v859 = vadd.f32 %v858, %v844
    %v860 = vrot.slane %v859, 4
    %v861 = vadd.f32 %v859, %v860
    %v862 = vrot.slane %v861, 2
    %v863 = vadd.f32 %v861, %v862
    %v864 = vrot.slane %v863, 1
    %v865 = vadd.f32 %v863, %v864
    %vm866 = vcmask 1040384
    %v867 = vsel %vm866, %v770, %v807
    %vm868 = vcmask 1041408
    %v869 = vsel %vm868, %v867, %v828
    %vm870 = vcmask 1042432
    %v871 = vsel %vm870, %v869, %v865
    %vm872 = vcmask 1043456
    %v873 = vsel %vm872, %v871, 0.0
    %874 = vst [vmem:[#allocation10] sm:$0xff] %v873
    %v875 = vpack.c.bf16 %v735, %v734
    %v876 = vpack.c.bf16 %v737, %v736
    %v877 = vpack.c.bf16 %v739, %v738
    %v878 = vpack.c.bf16 %v741, %v740
    %v879 = vpack.c.bf16 %v743, %v742
    %v880 = vpack.c.bf16 %v745, %v744
    %v881 = vpack.c.bf16 %v747, %v746
    %v882 = vpack.c.bf16 %v749, %v748
    %v891 = vunpack.c.l.b16 %v875
    %v892 = vunpack.c.h.b16 %v875
    %v893 = vunpack.c.l.b16 %v876
    %v894 = vunpack.c.h.b16 %v876
    %v895 = vunpack.c.l.b16 %v877
    %v896 = vunpack.c.h.b16 %v877
    %v897 = vunpack.c.l.b16 %v878
    %v898 = vunpack.c.h.b16 %v878
    %v899 = vunpack.c.l.b16 %v879
    %v900 = vunpack.c.h.b16 %v879
    %v901 = vunpack.c.l.b16 %v880
    %v902 = vunpack.c.h.b16 %v880
    %v903 = vunpack.c.l.b16 %v881
    %v904 = vunpack.c.h.b16 %v881
    %v905 = vunpack.c.l.b16 %v882
    %v906 = vunpack.c.h.b16 %v882
    %v907 = vpack.c.b16 %v891, %v891
    %v908 = vpack.c.b16 %v892, %v892
    %v909 = vpack.c.b16 %v893, %v893
    %v910 = vpack.c.b16 %v894, %v894
    %v911 = vpack.c.b16 %v895, %v895
    %v912 = vpack.c.b16 %v896, %v896
    %v913 = vpack.c.b16 %v897, %v897
    %v914 = vpack.c.b16 %v898, %v898
    %v915 = vpack.c.b16 %v899, %v899
    %v916 = vpack.c.b16 %v900, %v900
    %v917 = vpack.c.b16 %v901, %v901
    %v918 = vpack.c.b16 %v902, %v902
    %v919 = vpack.c.b16 %v903, %v903
    %v920 = vpack.c.b16 %v904, %v904
    %v921 = vpack.c.b16 %v905, %v905
    %v922 = vpack.c.b16 %v906, %v906
    %939 = vst [vmem:[#allocation7] sm:$0xf] %v907
    %940 = vst [vmem:[#allocation7 + $0x4] sm:$0xf] %v908
    %941 = vst [vmem:[#allocation7 + $0x8] sm:$0xf] %v909
    %942 = vst [vmem:[#allocation7 + $0xc] sm:$0xf] %v910
    %943 = vst [vmem:[#allocation7 + $0x10] sm:$0xf] %v911
    %944 = vst [vmem:[#allocation7 + $0x14] sm:$0xf] %v912
    %945 = vst [vmem:[#allocation7 + $0x18] sm:$0xf] %v913
    %946 = vst [vmem:[#allocation7 + $0x1c] sm:$0xf] %v914
    %947 = vst [vmem:[#allocation7 + $0x20] sm:$0xf] %v915
    %948 = vst [vmem:[#allocation7 + $0x24] sm:$0xf] %v916
    %949 = vst [vmem:[#allocation7 + $0x28] sm:$0xf] %v917
    %950 = vst [vmem:[#allocation7 + $0x2c] sm:$0xf] %v918
    %951 = vst [vmem:[#allocation7 + $0x30] sm:$0xf] %v919
    %952 = vst [vmem:[#allocation7 + $0x34] sm:$0xf] %v920
    %953 = vst [vmem:[#allocation7 + $0x38] sm:$0xf] %v921
    %954 = vst [vmem:[#allocation7 + $0x3c] sm:$0xf] %v922
    %v955 = vpack.c.bf16 %v438, %v434
    %v956 = vpack.c.bf16 %v448, %v444
    %v957 = vpack.c.bf16 %v458, %v454
    %v958 = vpack.c.bf16 %v468, %v464
    %v959 = vpack.c.bf16 %v478, %v474
    %v960 = vpack.c.bf16 %v488, %v484
    %v961 = vpack.c.bf16 %v498, %v494
    %v962 = vpack.c.bf16 %v508, %v504
    %v971 = vunpack.c.l.b16 %v955
    %v972 = vunpack.c.h.b16 %v955
    %v973 = vunpack.c.l.b16 %v956
    %v974 = vunpack.c.h.b16 %v956
    %v975 = vunpack.c.l.b16 %v957
    %v976 = vunpack.c.h.b16 %v957
    %v977 = vunpack.c.l.b16 %v958
    %v978 = vunpack.c.h.b16 %v958
    %v979 = vunpack.c.l.b16 %v959
    %v980 = vunpack.c.h.b16 %v959
    %v981 = vunpack.c.l.b16 %v960
    %v982 = vunpack.c.h.b16 %v960
    %v983 = vunpack.c.l.b16 %v961
    %v984 = vunpack.c.h.b16 %v961
    %v985 = vunpack.c.l.b16 %v962
    %v986 = vunpack.c.h.b16 %v962
    %v987 = vpack.c.b16 %v971, %v971
    %v988 = vpack.c.b16 %v972, %v972
    %v989 = vpack.c.b16 %v973, %v973
    %v990 = vpack.c.b16 %v974, %v974
    %v991 = vpack.c.b16 %v975, %v975
    %v992 = vpack.c.b16 %v976, %v976
    %v993 = vpack.c.b16 %v977, %v977
    %v994 = vpack.c.b16 %v978, %v978
    %v995 = vpack.c.b16 %v979, %v979
    %v996 = vpack.c.b16 %v980, %v980
    %v997 = vpack.c.b16 %v981, %v981
    %v998 = vpack.c.b16 %v982, %v982
    %v999 = vpack.c.b16 %v983, %v983
    %v1000 = vpack.c.b16 %v984, %v984
    %v1001 = vpack.c.b16 %v985, %v985
    %v1002 = vpack.c.b16 %v986, %v986
    %1019 = vst [vmem:[#allocation8] sm:$0xf] %v987
    %1020 = vst [vmem:[#allocation8 + $0x4] sm:$0xf] %v988
    %1021 = vst [vmem:[#allocation8 + $0x8] sm:$0xf] %v989
    %1022 = vst [vmem:[#allocation8 + $0xc] sm:$0xf] %v990
    %1023 = vst [vmem:[#allocation8 + $0x10] sm:$0xf] %v991
    %1024 = vst [vmem:[#allocation8 + $0x14] sm:$0xf] %v992
    %1025 = vst [vmem:[#allocation8 + $0x18] sm:$0xf] %v993
    %1026 = vst [vmem:[#allocation8 + $0x1c] sm:$0xf] %v994
    %1027 = vst [vmem:[#allocation8 + $0x20] sm:$0xf] %v995
    %1028 = vst [vmem:[#allocation8 + $0x24] sm:$0xf] %v996
    %1029 = vst [vmem:[#allocation8 + $0x28] sm:$0xf] %v997
    %1030 = vst [vmem:[#allocation8 + $0x2c] sm:$0xf] %v998
    %1031 = vst [vmem:[#allocation8 + $0x30] sm:$0xf] %v999
    %1032 = vst [vmem:[#allocation8 + $0x34] sm:$0xf] %v1000
    %1033 = vst [vmem:[#allocation8 + $0x38] sm:$0xf] %v1001
    %1034 = vst [vmem:[#allocation8 + $0x3c] sm:$0xf] %v1002
    // Predicated region
    $region18: #{tpu_custom_call.1} parent=1 // pred_check
      _
    $region19: #{tpu_custom_call.1} parent=1 // pred_check_branch
      %1036 = sbr.rel (0) target = $region21
    $region20: #{tpu_custom_call.1} parent=1 // pred_region
      %s1038 = ssub.s32 1024, 1024
      %1039 = vsyncadd [#allocation4], %s1038
      %s1040 = sshll.u32 [#allocation7], 4
      %s1041 = int_to_ptr.vmem [resolvable:$true] %s1040
      %1046 = dma.vmem_to_hbm [thread:$0]  %s1041, 1024, %s2, [#allocation4], 64, 64, 4
    $region21: #{tpu_custom_call.1} parent=1 // pred_fallthru
      _
    // Predicated region
    $region22: #{tpu_custom_call.1} parent=1 // pred_check
      _
    $region23: #{tpu_custom_call.1} parent=1 // pred_check_branch
      %1048 = sbr.rel (0) target = $region25
    $region24: #{tpu_custom_call.1} parent=1 // pred_region
      %s1050 = ssub.s32 1024, 1024
      %1051 = vsyncadd [#allocation9], %s1050
      %s1052 = sshll.u32 [#allocation8], 4
      %s1053 = int_to_ptr.vmem [resolvable:$true] %s1052
      %1058 = dma.vmem_to_hbm [thread:$0]  %s1053, 1024, %s3, [#allocation9], 64, 64, 4
    $region25: #{tpu_custom_call.1} parent=1 // pred_fallthru
      _
    // Predicated region
    $region26: #{tpu_custom_call.1} parent=1 // pred_check
      _
    $region27: #{tpu_custom_call.1} parent=1 // pred_check_branch
      %1060 = sbr.rel (0) target = $region29
    $region28: #{tpu_custom_call.1} parent=1 // pred_region
      %s1062 = ssub.s32 128, 128
      %1063 = vsyncadd [#allocation9], %s1062
      %s1065 = sshll.u32 [#allocation10], 4
      %s1066 = int_to_ptr.vmem [resolvable:$true] %s1065
      %1068 = dma.vmem_to_hbm [thread:$0]  %s1066, 128, %s4, [#allocation9]
    $region29: #{tpu_custom_call.1} parent=1 // pred_fallthru
      _
    // Predicated region
    $region30: #{tpu_custom_call.1} parent=1 // pred_check
      _
    $region31: #{tpu_custom_call.1} parent=1 // pred_check_branch
      %1070 = sbr.rel (0) target = $region33
    $region32: #{tpu_custom_call.1} parent=1 // pred_region
      %1071 = dma.done [#allocation4], 1024
    $region33: #{tpu_custom_call.1} parent=1 // pred_fallthru
      _
    // Predicated region
    $region34: #{tpu_custom_call.1} parent=1 // pred_check
      _
    $region35: #{tpu_custom_call.1} parent=1 // pred_check_branch
      %1073 = sbr.rel (0) target = $region37
    $region36: #{tpu_custom_call.1} parent=1 // pred_region
      %1074 = dma.done [#allocation9], 1024
    $region37: #{tpu_custom_call.1} parent=1 // pred_fallthru
      _
    // Predicated region
    $region38: #{tpu_custom_call.1} parent=1 // pred_check
      _
    $region39: #{tpu_custom_call.1} parent=1 // pred_check_branch
      %1076 = sbr.rel (0) target = $region41
    $region40: #{tpu_custom_call.1} parent=1 // pred_region
      %1077 = dma.done [#allocation9], 128
    $region41: #{tpu_custom_call.1} parent=1 // pred_fallthru
      _
    %1078 = vsyncpa [#allocation3], 1
    %1079 = vsyncpa [#allocation6], 1
    %1080 = vsyncpa [#allocation4], 1
    %1081 = vsyncpa [#allocation9], 1

</llo_original>
